<compile_context>
chip_gen: v7x
topology: tpu7x:2x2x1
jax: 0.10.0
libtpu: 0.0.40
codegen_flags: <defaults>
</compile_context>

<pallas_src>
import jax
import jax.numpy as jnp
from jax.experimental import pallas as pl
from jax.experimental.pallas import tpu as pltpu


def linear_relu_kernel(x_ref, w_ref, b_ref, o_ref):
    # x_ref: (tm, tk) bf16    w_ref: (tk, tn) bf16   [weight already (K, N)]
    # b_ref: (1, tn) f32      o_ref: (tm, tn) f32 — resident across the K axis
    k = pl.program_id(2)

    partial = jnp.dot(x_ref[...], w_ref[...], preferred_element_type=jnp.float32)

    @pl.when(k == 0)
    def _():
        o_ref[...] = partial            # first partial: direct store, no zero-fill

    @pl.when(k != 0)
    def _():
        o_ref[...] += partial           # accumulate in-place in the resident block

    @pl.when(k == pl.num_programs(2) - 1)
    def _():
        o_ref[...] = jnp.maximum(o_ref[...] + b_ref[...], 0.0)


def _round_up(x, m):
    return ((x + m - 1) // m) * m


def _vmem_limit_bytes():
    try:
        info = pltpu.get_tpu_info()
        cap = int(getattr(info, "vmem_capacity_bytes", 64 * 1024 * 1024))
    except Exception:
        cap = 64 * 1024 * 1024
    # ~70% of physical VMEM, clamped to a sane range (v7x: 64 MiB; v5e/v6e: 128 MiB).
    return max(32 * 1024 * 1024, min(int(cap * 0.7), 112 * 1024 * 1024))


def assist_model_forward(x, weight, bias, *, tm_cap=512, tn_cap=512, tk_cap=2048):
    """x: (B, IN) f32; weight: (OUT, IN) f32 (PyTorch layout); bias: (OUT,) f32."""
    M, K = x.shape
    N, K2 = weight.shape
    assert K2 == K
    assert bias.shape == (N,)

    # ---- tile selection: pad-to-tile keeps every block (8, 128)-aligned ----
    tm = min(_round_up(M, 8), tm_cap)      # tm = M for small/medium batch
    tn = min(_round_up(N, 128), tn_cap)    # lane-dense output tile
    tk = min(_round_up(K, 128), tk_cap)    # big reduction step -> few acc RMW passes

    Mp = _round_up(M, tm)
    Np = _round_up(N, tn)
    Kp = _round_up(K, tk)

    # v7x megacore: if the M axis collapses to one block, keep >= 2 N blocks so
    # both TensorCores have parallel work (costs only ~0.35us/step on 1-TC chips).
    if Mp // tm == 1 and Np // tn < 2 and tn >= 256:
        tn = max(128, (tn // 2) // 128 * 128)
        Np = _round_up(N, tn)

    grid = (Mp // tm, Np // tn, Kp // tk)

    # ---- wrapper-side layout: pad, transpose weight to (K, N), cast to bf16 ----
    xp = x if (Mp == M and Kp == K) else jnp.pad(x, ((0, Mp - M), (0, Kp - K)))
    wt = weight.T                                           # (K, N), fused with the cast
    wtp = wt if (Kp == K and Np == N) else jnp.pad(wt, ((0, Kp - K), (0, Np - N)))
    bp = bias if Np == N else jnp.pad(bias, (0, Np - N))

    x_bf = xp.astype(jnp.bfloat16)
    w_bf = wtp.astype(jnp.bfloat16)
    b2d = bp.reshape(1, Np).astype(jnp.float32)

    cost = pl.CostEstimate(
        flops=2 * Mp * Np * Kp,
        bytes_accessed=2 * (Mp * Kp + Kp * Np) + 4 * (Mp * Np + Np),
        transcendentals=0,
    )

    out_p = pl.pallas_call(
        linear_relu_kernel,
        out_shape=jax.ShapeDtypeStruct((Mp, Np), jnp.float32),
        grid_spec=pl.GridSpec(
            grid=grid,
            in_specs=[
                pl.BlockSpec((tm, tk), lambda i, j, k: (i, k)),   # x tile
                pl.BlockSpec((tk, tn), lambda i, j, k: (k, j)),   # weight tile (K, N)
                pl.BlockSpec((1, tn), lambda i, j, k: (0, j)),    # bias: ignores k
            ],
            out_specs=pl.BlockSpec((tm, tn), lambda i, j, k: (i, j)),
        ),
        compiler_params=pltpu.CompilerParams(
            dimension_semantics=("parallel", "parallel", "arbitrary"),
            vmem_limit_bytes=_vmem_limit_bytes(),
        ),
        cost_estimate=cost,
    )(x_bf, w_bf, b2d)

    return out_p[:M, :N].astype(x.dtype)


def _reference(x, weight, bias):
    return jnp.maximum(x @ weight.T + bias, 0.0)


def _make(key, B, IN, OUT):
    kx, kw, kb = jax.random.split(key, 3)
    x = jax.random.normal(kx, (B, IN), dtype=jnp.float32)
    bound = 1.0 / float(IN) ** 0.5
    w = jax.random.uniform(kw, (OUT, IN), jnp.float32, -bound, bound)
    b = jax.random.uniform(kb, (OUT,), jnp.float32, -bound, bound)
    return x, w, b


if __name__ == "__main__":
    key = jax.random.PRNGKey(0)
    k1, k2, k3 = jax.random.split(key, 3)

    # bf16 MXU operands (f32 accumulation) -> loosened tolerances vs pure-f32.
    TOL = dict(atol=3e-2, rtol=3e-2)

    # 1) Small shapes consistent with the module: batch=2, input=32, output=48.
    x, w, b = _make(k1, 2, 32, 48)
    out = assist_model_forward(x, w, b)
    jax.block_until_ready(out)
    ref = _reference(x, w, b)
    assert out.shape == ref.shape == (2, 48)
    assert jnp.allclose(out, ref, **TOL), float(jnp.max(jnp.abs(out - ref)))

    # 2) Non-aligned dims + forced multi-step K reduction (padding + accumulator path).
    x, w, b = _make(k2, 16, 300, 200)
    out = assist_model_forward(x, w, b, tk_cap=128)
    jax.block_until_ready(out)
    ref = _reference(x, w, b)
    assert out.shape == ref.shape == (16, 200)
    assert jnp.allclose(out, ref, **TOL), float(jnp.max(jnp.abs(out - ref)))

    # 3) Larger case: exercises N tiling, megacore N-split heuristic, big tk.
    x, w, b = _make(k3, 128, 1024, 256)
    out = assist_model_forward(x, w, b)
    jax.block_until_ready(out)
    ref = _reference(x, w, b)
    assert out.shape == ref.shape == (128, 256)
    assert jnp.allclose(out, ref, **TOL), float(jnp.max(jnp.abs(out - ref)))

    print("KERNEL_OK")
</pallas_src>

<mosaic_0001>
module attributes {stable_mosaic.version = 11 : i64} {
  func.func @linear_relu_kernel(%arg0: i32, %arg1: i32, %arg2: i32, %arg3: memref<8x128xbf16, #tpu.memory_space<vmem>>, %arg4: memref<128x128xbf16, #tpu.memory_space<vmem>>, %arg5: memref<1x128xf32, #tpu.memory_space<vmem>>, %arg6: memref<8x128xf32, #tpu.memory_space<vmem>>) attributes {dimension_semantics = [#tpu.dimension_semantics<parallel>, #tpu.dimension_semantics<parallel>, #tpu.dimension_semantics<arbitrary>], iteration_bounds = array<i64: 1, 1, 1>, scalar_prefetch = 0 : i64, scratch_operands = 0 : i64, tpu.core_type = #tpu.core_type<tc>, window_params = [{transform_indices = @transform_0, window_bounds = array<i64: 8, 128>}, {transform_indices = @transform_1, window_bounds = array<i64: 128, 128>}, {transform_indices = @transform_2, window_bounds = array<i64: 1, 128>}, {transform_indices = @transform_3, window_bounds = array<i64: 8, 128>}]} {
    %c0 = arith.constant 0 : index
    %c0_0 = arith.constant 0 : index
    %0 = vector.load %arg3[%c0, %c0_0] : memref<8x128xbf16, #tpu.memory_space<vmem>>, vector<8x128xbf16>
    %c0_1 = arith.constant 0 : index
    %c0_2 = arith.constant 0 : index
    %1 = vector.load %arg4[%c0_1, %c0_2] : memref<128x128xbf16, #tpu.memory_space<vmem>>, vector<128x128xbf16>
    %cst = arith.constant dense<0.000000e+00> : vector<8x128xf32>
    %2 = tpu.matmul %0, %1, %cst {dimension_numbers = #tpu.dot_dimension_numbers<[1], [0], [0], [1], [0, 0, 1, 1], [], []>} : vector<8x128xbf16>, vector<128x128xbf16>, vector<8x128xf32> -> vector<8x128xf32>
    %c0_i32 = arith.constant 0 : i32
    %3 = arith.cmpi eq, %arg2, %c0_i32 : i32
    %4 = arith.extui %3 : i1 to i32
    %c0_i32_3 = arith.constant 0 : i32
    %5 = arith.cmpi ne, %4, %c0_i32_3 : i32
    scf.if %5 {
      %c0_8 = arith.constant 0 : index
      %c0_9 = arith.constant 0 : index
      %12 = vector.load %arg6[%c0_8, %c0_9] : memref<8x128xf32, #tpu.memory_space<vmem>>, vector<8x128xf32>
      tpu.vector_store %arg6[%c0_8, %c0_9], %2 {strides = array<i32>} : memref<8x128xf32, #tpu.memory_space<vmem>>, vector<8x128xf32>,
    } else {
    }
    %c0_i32_4 = arith.constant 0 : i32
    %6 = arith.cmpi ne, %arg2, %c0_i32_4 : i32
    %7 = arith.extui %6 : i1 to i32
    %c0_i32_5 = arith.constant 0 : i32
    %8 = arith.cmpi ne, %7, %c0_i32_5 : i32
    scf.if %8 {
      %c0_8 = arith.constant 0 : index
      %c0_9 = arith.constant 0 : index
      %12 = vector.load %arg6[%c0_8, %c0_9] : memref<8x128xf32, #tpu.memory_space<vmem>>, vector<8x128xf32>
      %13 = arith.addf %12, %2 : vector<8x128xf32>
      %c0_10 = arith.constant 0 : index
      %c0_11 = arith.constant 0 : index
      %14 = vector.load %arg6[%c0_10, %c0_11] : memref<8x128xf32, #tpu.memory_space<vmem>>, vector<8x128xf32>
      tpu.vector_store %arg6[%c0_10, %c0_11], %13 {strides = array<i32>} : memref<8x128xf32, #tpu.memory_space<vmem>>, vector<8x128xf32>,
    } else {
    }
    %c0_i32_6 = arith.constant 0 : i32
    %9 = arith.cmpi eq, %arg2, %c0_i32_6 : i32
    %10 = arith.extui %9 : i1 to i32
    %c0_i32_7 = arith.constant 0 : i32
    %11 = arith.cmpi ne, %10, %c0_i32_7 : i32
    scf.if %11 {
      %c0_8 = arith.constant 0 : index
      %c0_9 = arith.constant 0 : index
      %12 = vector.load %arg6[%c0_8, %c0_9] : memref<8x128xf32, #tpu.memory_space<vmem>>, vector<8x128xf32>
      %c0_10 = arith.constant 0 : index
      %c0_11 = arith.constant 0 : index
      %13 = vector.load %arg5[%c0_10, %c0_11] : memref<1x128xf32, #tpu.memory_space<vmem>>, vector<1x128xf32>
      %14 = vector.broadcast %13 : vector<1x128xf32> to vector<8x128xf32>
      %15 = arith.addf %12, %14 : vector<8x128xf32>
      %cst_12 = arith.constant 0.000000e+00 : f32
      %16 = vector.broadcast %cst_12 : f32 to vector<8x128xf32>
      %17 = arith.maximumf %15, %16 : vector<8x128xf32>
      %c0_13 = arith.constant 0 : index
      %c0_14 = arith.constant 0 : index
      %18 = vector.load %arg6[%c0_13, %c0_14] : memref<8x128xf32, #tpu.memory_space<vmem>>, vector<8x128xf32>
      tpu.vector_store %arg6[%c0_13, %c0_14], %17 {strides = array<i32>} : memref<8x128xf32, #tpu.memory_space<vmem>>, vector<8x128xf32>,
    } else {
    }
    return
  }
  func.func @transform_0(%arg0: i32, %arg1: i32, %arg2: i32) -> (i32, i32) {
    %c0_i32 = arith.constant 0 : i32
    return %arg0, %arg2 : i32, i32
  }
  func.func @transform_1(%arg0: i32, %arg1: i32, %arg2: i32) -> (i32, i32) {
    %c0_i32 = arith.constant 0 : i32
    return %arg2, %arg1 : i32, i32
  }
  func.func @transform_2(%arg0: i32, %arg1: i32, %arg2: i32) -> (i32, i32) {
    %c0_i32 = arith.constant 0 : i32
    %c0_i32_0 = arith.constant 0 : i32
    return %c0_i32, %arg1 : i32, i32
  }
  func.func @transform_3(%arg0: i32, %arg1: i32, %arg2: i32) -> (i32, i32) {
    %c0_i32 = arith.constant 0 : i32
    return %arg0, %arg1 : i32, i32
  }
}

</mosaic_0001>

<llo_original>
// kernel: tpu_custom_call.1
$region0: #{tpu_custom_call.1}
  #allocation0 [shape = 'u32[]', space=smem, size = 0x4, offset = 0x4, fixed_abs, tag = 'smem constant byte address 0x4 - core index']
  #allocation1 [shape = 'u32[144,128]{1,0:T(1,128)}', space=vmem, size = 0x12000, scoped, tag = 'internal scratch']
  %s0 = inlined_call_operand.hbm [shape: bf16[8,128], index: 0, kind: input, shape index: {}]
  %s1 = inlined_call_operand.hbm [shape: bf16[128,128], index: 1, kind: input, shape index: {}]
  %s2 = inlined_call_operand.vmem [shape: f32[1,128], index: 2, kind: input, shape index: {}]
  %s3 = inlined_call_operand.hbm [shape: f32[8,128], index: 3, kind: output, shape index: {}]
  %s4 = sld [smem:[#allocation0]]
  $region42: #{tpu_custom_call.1} parent=0
    _
  %s6 = ssub.s32 1, %s4
  %s7 = scalar_select 0, %s6, %s4
  $region1: #{tpu_custom_call.1} parent=0
    #allocation2 [shape = 'u8[2048]{0}', space=vmem, size = 0x800, scoped, tag = 'input window, operand 0, single buffered']
    #allocation3 [shape = 's32[1]{0}', space=sflag, size = 0x4, scoped, tag = 'scoped memory for tpu_custom_call.1']
    #allocation4 [shape = 's32[1]{0}', space=sflag, size = 0x4, scoped, tag = 'scoped memory for tpu_custom_call.1']
    #allocation5 [shape = 'u8[32768]{0}', space=vmem, size = 0x8000, scoped, tag = 'input window, operand 1, single buffered']
    #allocation6 [shape = 's32[1]{0}', space=sflag, size = 0x4, scoped, tag = 'scoped memory for tpu_custom_call.1']
    #allocation7 [shape = 'u8[4096]{0}', space=vmem, size = 0x1000, scoped, tag = 'output window, operand 0, single buffered']
    %8 = vsyncpa [#allocation3], 0
    %9 = vsyncpa [#allocation6], 0
    %10 = vsyncpa [#allocation4], 0
    // Predicated region
    $region2: #{tpu_custom_call.1} parent=1 // pred_check
      _
    $region3: #{tpu_custom_call.1} parent=1 // pred_check_branch
      %12 = sbr.rel (0) target = $region5
    $region4: #{tpu_custom_call.1} parent=1 // pred_region
      %s14 = ssub.s32 64, 64
      %15 = vsyncadd [#allocation3], %s14
      %s17 = sshll.u32 [#allocation2], 4
      %s18 = int_to_ptr.vmem [resolvable:$true] %s17
      %20 = dma.hbm_to_vmem [thread:$0]  %s0, 64, %s18, [#allocation3]
    $region5: #{tpu_custom_call.1} parent=1 // pred_fallthru
      _
    // Predicated region
    $region6: #{tpu_custom_call.1} parent=1 // pred_check
      _
    $region7: #{tpu_custom_call.1} parent=1 // pred_check_branch
      %22 = sbr.rel (0) target = $region9
    $region8: #{tpu_custom_call.1} parent=1 // pred_region
      %s24 = ssub.s32 1024, 1024
      %25 = vsyncadd [#allocation6], %s24
      %s26 = sshll.u32 [#allocation5], 4
      %s27 = int_to_ptr.vmem [resolvable:$true] %s26
      %32 = dma.hbm_to_vmem [thread:$0]  %s1, 1024, %s27, [#allocation6], 64, 64, 4
    $region9: #{tpu_custom_call.1} parent=1 // pred_fallthru
      _
    // Predicated region
    $region10: #{tpu_custom_call.1} parent=1 // pred_check
      _
    $region11: #{tpu_custom_call.1} parent=1 // pred_check_branch
      %34 = sbr.rel (0) target = $region13
    $region12: #{tpu_custom_call.1} parent=1 // pred_region
      _
    $region13: #{tpu_custom_call.1} parent=1 // pred_fallthru
      _
    // Predicated region
    $region14: #{tpu_custom_call.1} parent=1 // pred_check
      _
    $region15: #{tpu_custom_call.1} parent=1 // pred_check_branch
      %36 = sbr.rel (0) target = $region17
    $region16: #{tpu_custom_call.1} parent=1 // pred_region
      %37 = dma.done [#allocation3], 64
    $region17: #{tpu_custom_call.1} parent=1 // pred_fallthru
      _
    // Predicated region
    $region18: #{tpu_custom_call.1} parent=1 // pred_check
      _
    $region19: #{tpu_custom_call.1} parent=1 // pred_check_branch
      %39 = sbr.rel (0) target = $region21
    $region20: #{tpu_custom_call.1} parent=1 // pred_region
      %40 = dma.done [#allocation6], 1024
    $region21: #{tpu_custom_call.1} parent=1 // pred_fallthru
      _
    %v42 = vld [vmem:[#allocation2] sm:$0xf]
    %v43 = vld [vmem:[#allocation5] sm:$0xf]
    %v44 = vld [vmem:[#allocation5 + $0x4] sm:$0xf]
    %v45 = vld [vmem:[#allocation5 + $0x8] sm:$0xf]
    %v46 = vld [vmem:[#allocation5 + $0xc] sm:$0xf]
    %v47 = vld [vmem:[#allocation5 + $0x10] sm:$0xf]
    %v48 = vld [vmem:[#allocation5 + $0x14] sm:$0xf]
    %v49 = vld [vmem:[#allocation5 + $0x18] sm:$0xf]
    %v50 = vld [vmem:[#allocation5 + $0x1c] sm:$0xf]
    %v51 = vld [vmem:[#allocation5 + $0x20] sm:$0xf]
    %v52 = vld [vmem:[#allocation5 + $0x24] sm:$0xf]
    %v53 = vld [vmem:[#allocation5 + $0x28] sm:$0xf]
    %v54 = vld [vmem:[#allocation5 + $0x2c] sm:$0xf]
    %v55 = vld [vmem:[#allocation5 + $0x30] sm:$0xf]
    %v56 = vld [vmem:[#allocation5 + $0x34] sm:$0xf]
    %v57 = vld [vmem:[#allocation5 + $0x38] sm:$0xf]
    %v58 = vld [vmem:[#allocation5 + $0x3c] sm:$0xf]
    %v75 = vunpack.c.l.b16 %v43
    %v76 = vunpack.c.l.b16 %v44
    %v77 = vunpack.c.l.b16 %v45
    %v78 = vunpack.c.l.b16 %v46
    %v79 = vunpack.c.l.b16 %v47
    %v80 = vunpack.c.l.b16 %v48
    %v81 = vunpack.c.l.b16 %v49
    %v82 = vunpack.c.l.b16 %v50
    %v83 = vunpack.c.l.b16 %v51
    %v84 = vunpack.c.l.b16 %v52
    %v85 = vunpack.c.l.b16 %v53
    %v86 = vunpack.c.l.b16 %v54
    %v87 = vunpack.c.l.b16 %v55
    %v88 = vunpack.c.l.b16 %v56
    %v89 = vunpack.c.l.b16 %v57
    %v90 = vunpack.c.l.b16 %v58
    %v91 = vpack.c.b16 %v76, %v75
    %v92 = vpack.c.b16 %v78, %v77
    %v93 = vpack.c.b16 %v80, %v79
    %v94 = vpack.c.b16 %v82, %v81
    %v95 = vpack.c.b16 %v84, %v83
    %v96 = vpack.c.b16 %v86, %v85
    %v97 = vpack.c.b16 %v88, %v87
    %v98 = vpack.c.b16 %v90, %v89
    %107 = vmatprep.subr.bf16.mxu0 0
    %108 = vmatpush1.bf16.msra.mxu0 %v91
    %109 = vmatprep.subr.bf16.mxu0 0
    %110 = vmatpush1.bf16.msra.mxu0 %v92
    %111 = vmatprep.subr.bf16.mxu0 0
    %112 = vmatpush1.bf16.msra.mxu0 %v93
    %113 = vmatprep.subr.bf16.mxu0 0
    %114 = vmatpush1.bf16.msra.mxu0 %v94
    %115 = vmatprep.subr.bf16.mxu0 0
    %116 = vmatpush1.bf16.msra.mxu0 %v95
    %117 = vmatprep.subr.bf16.mxu0 0
    %118 = vmatpush1.bf16.msra.mxu0 %v96
    %119 = vmatprep.subr.bf16.mxu0 0
    %120 = vmatpush1.bf16.msra.mxu0 %v97
    %121 = vmatprep.subr.bf16.mxu0 0
    %122 = vmatpush1.bf16.msra.mxu0 %v98
    %123 = vmatprep.subr.bf16.mxu0 0
    %124 = vmatpush1.bf16.msra.mxu0 0
    %125 = vmatprep.subr.bf16.mxu0 0
    %126 = vmatpush1.bf16.msra.mxu0 0
    %127 = vmatprep.subr.bf16.mxu0 0
    %128 = vmatpush1.bf16.msra.mxu0 0
    %129 = vmatprep.subr.bf16.mxu0 0
    %130 = vmatpush1.bf16.msra.mxu0 0
    %131 = vmatprep.subr.bf16.mxu0 0
    %132 = vmatpush1.bf16.msra.mxu0 0
    %133 = vmatprep.subr.bf16.mxu0 0
    %134 = vmatpush1.bf16.msra.mxu0 0
    %135 = vmatprep.subr.bf16.mxu0 0
    %136 = vmatpush1.bf16.msra.mxu0 0
    %137 = vmatprep.subr.bf16.mxu0 0
    %138 = vmatpush1.bf16.msra.mxu0 0
    %139 = vmatprep.mubr.bf16.mxu0 0
    %140 = vmatmul.mubr.bf16.gmra.mrb[0].mxu0 %v42
    %v141 = vpop.f32.mrb[0].mxu0
    %v142 = vadd.f32 0.0, %v141
    %v143 = vpop.f32.mrb[0].mxu0
    %v144 = vpop.f32.mrb[0].mxu0
    %v145 = vpop.f32.mrb[0].mxu0
    %146 = vdwg.mxu0
    %p147 = scmp.eq.s32.totalorder 0, 0
    // Predicated region
    $region22: #{tpu_custom_call.1} parent=1 // pred_check
      %p148 = pneg %p147
    $region23: #{tpu_custom_call.1} parent=1 // pred_check_branch
      %150 = sbr.rel (%p148) target = $region25
    $region24: #{tpu_custom_call.1} parent=1 // pred_region
      %151 = vst [vmem:[#allocation7] sm:$0xff] %v142
    $region25: #{tpu_custom_call.1} parent=1 // pred_fallthru
      _
    %p152 = scmp.ne.s32.totalorder 0, 0
    // Predicated region
    $region26: #{tpu_custom_call.1} parent=1 // pred_check
      %p153 = pneg %p152
    $region27: #{tpu_custom_call.1} parent=1 // pred_check_branch
      %155 = sbr.rel (%p153) target = $region29
    $region28: #{tpu_custom_call.1} parent=1 // pred_region
      %v156 = vld [vmem:[#allocation7] sm:$0xff]
      %v157 = vadd.f32 %v156, %v142
      %158 = vst [vmem:[#allocation7] sm:$0xff] %v157
    $region29: #{tpu_custom_call.1} parent=1 // pred_fallthru
      _
    // Predicated region
    $region30: #{tpu_custom_call.1} parent=1 // pred_check
      %p159 = pneg %p147
    $region31: #{tpu_custom_call.1} parent=1 // pred_check_branch
      %161 = sbr.rel (%p159) target = $region33
    $region32: #{tpu_custom_call.1} parent=1 // pred_region
      %v162 = vld [vmem:[#allocation7] sm:$0xff]
      %v163 = vld [vmem:[%s2] sm:$0x1]
      %v165 = vlaneseq
      %v166 = vshrl.u32 %v165, 7
      %v167 = vsub.s32 0, %v166
      %v168 = vrot.slane %v163, %v167
      %v170 = vadd.f32 %v162, %v168
      %v171 = vmax.f32 %v170, 0.0
      %172 = vst [vmem:[#allocation7] sm:$0xff] %v171
    $region33: #{tpu_custom_call.1} parent=1 // pred_fallthru
      _
    // Predicated region
    $region34: #{tpu_custom_call.1} parent=1 // pred_check
      _
    $region35: #{tpu_custom_call.1} parent=1 // pred_check_branch
      %174 = sbr.rel (0) target = $region37
    $region36: #{tpu_custom_call.1} parent=1 // pred_region
      %s176 = ssub.s32 128, 128
      %177 = vsyncadd [#allocation4], %s176
      %s179 = sshll.u32 [#allocation7], 4
      %s180 = int_to_ptr.vmem [resolvable:$true] %s179
      %182 = dma.vmem_to_hbm [thread:$0]  %s180, 128, %s3, [#allocation4]
    $region37: #{tpu_custom_call.1} parent=1 // pred_fallthru
      _
    // Predicated region
    $region38: #{tpu_custom_call.1} parent=1 // pred_check
      _
    $region39: #{tpu_custom_call.1} parent=1 // pred_check_branch
      %184 = sbr.rel (0) target = $region41
    $region40: #{tpu_custom_call.1} parent=1 // pred_region
      %185 = dma.done [#allocation4], 128
    $region41: #{tpu_custom_call.1} parent=1 // pred_fallthru
      _
    %186 = vsyncpa [#allocation3], 1
    %187 = vsyncpa [#allocation6], 1
    %188 = vsyncpa [#allocation4], 1

</llo_original>
